<compile_context>
chip_gen: v7x
topology: tpu7x:2x2x1
jax: 0.10.0
libtpu: 0.0.40
codegen_flags: <defaults>
</compile_context>

<pallas_src>
import functools
import math

import jax
import jax.numpy as jnp
from jax.experimental import pallas as pl
from jax.experimental.pallas import tpu as pltpu

PAD = 128  # lane width of the packed parameter buffer / output block


def _round_up(n, m):
    return ((n + m - 1) // m) * m


def a2c_kernel(x_ref, p_ref, out_ref, *, num_inputs, num_actions, hidden_size, offsets):
    """x_ref: (tile_m, F) f32; p_ref: (R, 128) bf16 packed params; out_ref: (tile_m, 128) f32."""
    F, A, H2 = num_inputs, num_actions, 2 * hidden_size
    r1, r2, r3, r4, rb = offsets

    def lin(h_f32, wrow, k, bias_row, ncols):
        w = p_ref[wrow:wrow + k, 0:ncols]                              # bf16 weights (static slice)
        b = p_ref[bias_row:bias_row + 1, 0:ncols].astype(jnp.float32)  # single bias row
        return jnp.dot(h_f32.astype(jnp.bfloat16), w,
                       preferred_element_type=jnp.float32) + b          # f32 accumulate on MXU

    x = x_ref[...]                                   # (tile_m, F) f32
    h = jnp.tanh(lin(x, r1, F, rb + 0, H2))          # fused critic|actor hidden 1  (tile_m, 2H)
    h = jnp.tanh(lin(h, r2, H2, rb + 1, H2))         # hidden 2 (block-diag weights)
    h = jnp.tanh(lin(h, r3, H2, rb + 2, H2))         # hidden 3
    raw = lin(h, r4, H2, rb + 3, PAD)                # (tile_m, 128): col0=value, cols 1..A=logits

    # softmax over the policy columns [1, 1+A); all other lanes masked out.
    col = jax.lax.broadcasted_iota(jnp.int32, raw.shape, 1)
    is_policy = (col >= 1) & (col < 1 + A)
    logits = jnp.where(is_policy, raw, jnp.float32(-1e30))
    m = jnp.max(logits, axis=-1, keepdims=True)
    e = jnp.exp(logits - m)                          # masked lanes underflow to exactly 0
    probs = e / jnp.sum(e, axis=-1, keepdims=True)   # exact divide (per review)

    # col 0 -> value, cols 1..A -> softmax probs, remaining lanes -> 0.
    out_ref[...] = jnp.where(col == 0, raw, probs)


def init_linear(key, fan_in, fan_out):
    """PyTorch nn.Linear default init: U(-1/sqrt(fan_in), 1/sqrt(fan_in)); W stored (in, out)."""
    kw, kb = jax.random.split(key)
    bound = 1.0 / math.sqrt(fan_in)
    w = jax.random.uniform(kw, (fan_in, fan_out), jnp.float32, -bound, bound)
    b = jax.random.uniform(kb, (1, fan_out), jnp.float32, -bound, bound)
    return w, b


def make_params(key, num_inputs, num_actions, hidden_size):
    keys = jax.random.split(key, 8)
    cw1, cb1 = init_linear(keys[0], num_inputs, hidden_size)
    cw2, cb2 = init_linear(keys[1], hidden_size, hidden_size)
    cw3, cb3 = init_linear(keys[2], hidden_size, hidden_size)
    cw4, cb4 = init_linear(keys[3], hidden_size, 1)
    aw1, ab1 = init_linear(keys[4], num_inputs, hidden_size)
    aw2, ab2 = init_linear(keys[5], hidden_size, hidden_size)
    aw3, ab3 = init_linear(keys[6], hidden_size, hidden_size)
    aw4, ab4 = init_linear(keys[7], hidden_size, num_actions)
    return (cw1, cb1, cw2, cb2, cw3, cb3, cw4, cb4,
            aw1, ab1, aw2, ab2, aw3, ab3, aw4, ab4)


def pack_params(params, num_inputs, num_actions, hidden_size):
    """Pack 8 weights + 8 biases into one bf16 (R, 128) buffer with real K extents.

    Row layout (all section starts rounded to multiples of 16 for clean bf16 tiling):
      [r1 : r1+F)    layer1: cols [0:H)=cw1, [H:2H)=aw1
      [r2 : r2+2H)   layer2: block-diag(cw2, aw2)
      [r3 : r3+2H)   layer3: block-diag(cw3, aw3)
      [r4 : r4+2H)   layer4: rows[0:H) col 0 = cw4; rows[H:2H) cols [1:1+A) = aw4
      [rb : rb+4)    biases: row i = fused bias of layer i+1 (same column layout)
    """
    (cw1, cb1, cw2, cb2, cw3, cb3, cw4, cb4,
     aw1, ab1, aw2, ab2, aw3, ab3, aw4, ab4) = params
    F, H, A = num_inputs, hidden_size, num_actions
    H2 = 2 * H
    assert H2 <= PAD and 1 + A <= PAD, "shapes exceed 128-lane padding"

    r1 = 0
    r2 = _round_up(r1 + F, 16)
    r3 = _round_up(r2 + H2, 16)
    r4 = _round_up(r3 + H2, 16)
    rb = _round_up(r4 + H2, 16)
    rows = _round_up(rb + 4, 16)
    offsets = (r1, r2, r3, r4, rb)

    buf = jnp.zeros((rows, PAD), jnp.float32)
    # layer 1 (fused side-by-side)
    buf = buf.at[r1:r1 + F, 0:H].set(cw1)
    buf = buf.at[r1:r1 + F, H:H2].set(aw1)
    # layer 2 (block diagonal)
    buf = buf.at[r2:r2 + H, 0:H].set(cw2)
    buf = buf.at[r2 + H:r2 + H2, H:H2].set(aw2)
    # layer 3 (block diagonal)
    buf = buf.at[r3:r3 + H, 0:H].set(cw3)
    buf = buf.at[r3 + H:r3 + H2, H:H2].set(aw3)
    # layer 4 (maps into final output layout: col 0 = value, cols 1..A = logits)
    buf = buf.at[r4:r4 + H, 0:1].set(cw4)
    buf = buf.at[r4 + H:r4 + H2, 1:1 + A].set(aw4)
    # biases (one row per layer)
    buf = buf.at[rb + 0, 0:H].set(cb1[0]);  buf = buf.at[rb + 0, H:H2].set(ab1[0])
    buf = buf.at[rb + 1, 0:H].set(cb2[0]);  buf = buf.at[rb + 1, H:H2].set(ab2[0])
    buf = buf.at[rb + 2, 0:H].set(cb3[0]);  buf = buf.at[rb + 2, H:H2].set(ab3[0])
    buf = buf.at[rb + 3, 0:1].set(cb4[0]);  buf = buf.at[rb + 3, 1:1 + A].set(ab4[0])
    return buf.astype(jnp.bfloat16), offsets


def a2c_forward(states, packed_params, offsets, num_inputs, num_actions, hidden_size,
                tile_m=256):
    """Batched forward.  `states` may be (F,) (mirrors unsqueeze(0)) or (B, F).

    Returns (value (B, 1), policy (B, A)).
    """
    x = jnp.asarray(states, jnp.float32)
    if x.ndim == 1:
        x = x[None, :]
    B, F = x.shape
    assert F == num_inputs

    # tile_m defaults to 256 (fills the v6e/v7x 256x256 MXU); capped at the padded batch.
    tile_m = max(8, min(tile_m, _round_up(B, 8)))
    b_pad = _round_up(B, tile_m)
    if b_pad != B:
        x = jnp.concatenate([x, jnp.zeros((b_pad - B, F), jnp.float32)], axis=0)

    rows = packed_params.shape[0]
    kernel = functools.partial(a2c_kernel, num_inputs=num_inputs, num_actions=num_actions,
                               hidden_size=hidden_size, offsets=offsets)
    out = pl.pallas_call(
        kernel,
        out_shape=jax.ShapeDtypeStruct((b_pad, PAD), jnp.float32),
        grid=(b_pad // tile_m,),
        in_specs=[
            pl.BlockSpec((tile_m, F), lambda i: (i, 0)),    # per-step state tile
            pl.BlockSpec((rows, PAD), lambda i: (0, 0)),    # params: one DMA, VMEM-resident
        ],
        out_specs=pl.BlockSpec((tile_m, PAD), lambda i: (i, 0)),
        compiler_params=pltpu.CompilerParams(dimension_semantics=("parallel",)),
    )(x, packed_params)

    value = out[:B, 0:1]                    # (B, 1)
    policy = out[:B, 1:1 + num_actions]     # (B, A)
    # TODO(synk): continuous=True path (torch.distributions.Normal over the actor output
    # with clamp(exp(logstds), 0.001, 50)) has no Pallas equivalent; only the discrete
    # softmax policy head is produced here.
    return value, policy


def a2c_reference(states, params):
    """Pure-JAX f32 reference using the ORIGINAL (unfused) parameters."""
    (cw1, cb1, cw2, cb2, cw3, cb3, cw4, cb4,
     aw1, ab1, aw2, ab2, aw3, ab3, aw4, ab4) = params
    x = jnp.asarray(states, jnp.float32)
    if x.ndim == 1:
        x = x[None, :]
    v = jnp.tanh(x @ cw1 + cb1)
    v = jnp.tanh(v @ cw2 + cb2)
    v = jnp.tanh(v @ cw3 + cb3)
    v = v @ cw4 + cb4
    p = jnp.tanh(x @ aw1 + ab1)
    p = jnp.tanh(p @ aw2 + ab2)
    p = jnp.tanh(p @ aw3 + ab3)
    p = jax.nn.softmax(p @ aw4 + ab4, axis=-1)
    return v, p


if __name__ == "__main__":
    num_inputs, num_actions, hidden_size = 16, 8, 32
    batch = 16

    key = jax.random.PRNGKey(0)
    k_params, k_state = jax.random.split(key)
    params = make_params(k_params, num_inputs, num_actions, hidden_size)
    packed, offsets = pack_params(params, num_inputs, num_actions, hidden_size)
    states = jax.random.normal(k_state, (batch, num_inputs), jnp.float32)

    # tile_m=8 gives a 2-step grid on this tiny demo batch; the params block has a
    # constant index_map so its DMA happens once and stays resident across the grid.
    value, policy = a2c_forward(states, packed, offsets, num_inputs, num_actions,
                                hidden_size, tile_m=8)
    jax.block_until_ready((value, policy))

    v_exp, p_exp = a2c_reference(states, params)
    assert value.shape == (batch, 1) and policy.shape == (batch, num_actions)
    # bf16 weights (f32 accumulate) -> tolerances loosened vs the pure-f32 reference.
    assert jnp.allclose(value, v_exp, atol=3e-2), "value mismatch"
    assert jnp.allclose(policy, p_exp, atol=2e-2), "policy mismatch"
    assert jnp.allclose(jnp.sum(policy, axis=-1), 1.0, atol=1e-3), "softmax not normalized"

    # Single-state path (mirrors `state.float().unsqueeze(0)` in the PyTorch module).
    v1, p1 = a2c_forward(states[0], packed, offsets, num_inputs, num_actions, hidden_size)
    jax.block_until_ready((v1, p1))
    assert v1.shape == (1, 1) and p1.shape == (1, num_actions)
    assert jnp.allclose(v1, v_exp[0:1], atol=3e-2), "single-state value mismatch"
    assert jnp.allclose(p1, p_exp[0:1], atol=2e-2), "single-state policy mismatch"

    print("KERNEL_OK")
</pallas_src>

<mosaic_0001>
module attributes {stable_mosaic.version = 11 : i64} {
  func.func @a2c_kernel(%arg0: i32, %arg1: memref<8x16xf32, #tpu.memory_space<vmem>>, %arg2: memref<224x128xbf16, #tpu.memory_space<vmem>>, %arg3: memref<8x128xf32, #tpu.memory_space<vmem>>) attributes {dimension_semantics = [#tpu.dimension_semantics<parallel>], iteration_bounds = array<i64: 2>, scalar_prefetch = 0 : i64, scratch_operands = 0 : i64, tpu.core_type = #tpu.core_type<tc>, window_params = [{transform_indices = @transform_0, window_bounds = array<i64: 8, 16>}, {pipeline_mode = #tpu.pipeline_mode<synchronous>, transform_indices = @transform_1, window_bounds = array<i64: 224, 128>}, {transform_indices = @transform_2, window_bounds = array<i64: 8, 128>}]} {
    %c0 = arith.constant 0 : index
    %c0_0 = arith.constant 0 : index
    %0 = vector.load %arg1[%c0, %c0_0] : memref<8x16xf32, #tpu.memory_space<vmem>>, vector<8x16xf32>
    %c0_1 = arith.constant 0 : index
    %c0_2 = arith.constant 0 : index
    %1 = vector.load %arg2[%c0_1, %c0_2] : memref<224x128xbf16, #tpu.memory_space<vmem>>, vector<16x64xbf16>
    %c208 = arith.constant 208 : index
    %c0_3 = arith.constant 0 : index
    %2 = vector.load %arg2[%c208, %c0_3] : memref<224x128xbf16, #tpu.memory_space<vmem>>, vector<1x64xbf16>
    %3 = arith.extf %2 : vector<1x64xbf16> to vector<1x64xf32>
    %4 = arith.truncf %0 : vector<8x16xf32> to vector<8x16xbf16>
    %cst = arith.constant dense<0.000000e+00> : vector<8x64xf32>
    %5 = tpu.matmul %4, %1, %cst {dimension_numbers = #tpu.dot_dimension_numbers<[1], [0], [0], [1], [0, 0, 1, 1], [], []>} : vector<8x16xbf16>, vector<16x64xbf16>, vector<8x64xf32> -> vector<8x64xf32>
    %6 = vector.broadcast %3 : vector<1x64xf32> to vector<8x64xf32>
    %7 = arith.addf %5, %6 : vector<8x64xf32>
    %8 = math.tanh %7 : vector<8x64xf32>
    %c16 = arith.constant 16 : index
    %c0_4 = arith.constant 0 : index
    %9 = vector.load %arg2[%c16, %c0_4] : memref<224x128xbf16, #tpu.memory_space<vmem>>, vector<64x64xbf16>
    %c209 = arith.constant 209 : index
    %c0_5 = arith.constant 0 : index
    %10 = vector.load %arg2[%c209, %c0_5] : memref<224x128xbf16, #tpu.memory_space<vmem>>, vector<1x64xbf16>
    %11 = arith.extf %10 : vector<1x64xbf16> to vector<1x64xf32>
    %12 = arith.truncf %8 : vector<8x64xf32> to vector<8x64xbf16>
    %cst_6 = arith.constant dense<0.000000e+00> : vector<8x64xf32>
    %13 = tpu.matmul %12, %9, %cst_6 {dimension_numbers = #tpu.dot_dimension_numbers<[1], [0], [0], [1], [0, 0, 1, 1], [], []>} : vector<8x64xbf16>, vector<64x64xbf16>, vector<8x64xf32> -> vector<8x64xf32>
    %14 = vector.broadcast %11 : vector<1x64xf32> to vector<8x64xf32>
    %15 = arith.addf %13, %14 : vector<8x64xf32>
    %16 = math.tanh %15 : vector<8x64xf32>
    %c80 = arith.constant 80 : index
    %c0_7 = arith.constant 0 : index
    %17 = vector.load %arg2[%c80, %c0_7] : memref<224x128xbf16, #tpu.memory_space<vmem>>, vector<64x64xbf16>
    %c210 = arith.constant 210 : index
    %c0_8 = arith.constant 0 : index
    %18 = vector.load %arg2[%c210, %c0_8] : memref<224x128xbf16, #tpu.memory_space<vmem>>, vector<1x64xbf16>
    %19 = arith.extf %18 : vector<1x64xbf16> to vector<1x64xf32>
    %20 = arith.truncf %16 : vector<8x64xf32> to vector<8x64xbf16>
    %cst_9 = arith.constant dense<0.000000e+00> : vector<8x64xf32>
    %21 = tpu.matmul %20, %17, %cst_9 {dimension_numbers = #tpu.dot_dimension_numbers<[1], [0], [0], [1], [0, 0, 1, 1], [], []>} : vector<8x64xbf16>, vector<64x64xbf16>, vector<8x64xf32> -> vector<8x64xf32>
    %22 = vector.broadcast %19 : vector<1x64xf32> to vector<8x64xf32>
    %23 = arith.addf %21, %22 : vector<8x64xf32>
    %24 = math.tanh %23 : vector<8x64xf32>
    %c144 = arith.constant 144 : index
    %c0_10 = arith.constant 0 : index
    %25 = vector.load %arg2[%c144, %c0_10] : memref<224x128xbf16, #tpu.memory_space<vmem>>, vector<64x128xbf16>
    %c211 = arith.constant 211 : index
    %c0_11 = arith.constant 0 : index
    %26 = vector.load %arg2[%c211, %c0_11] : memref<224x128xbf16, #tpu.memory_space<vmem>>, vector<1x128xbf16>
    %27 = arith.extf %26 : vector<1x128xbf16> to vector<1x128xf32>
    %28 = arith.truncf %24 : vector<8x64xf32> to vector<8x64xbf16>
    %cst_12 = arith.constant dense<0.000000e+00> : vector<8x128xf32>
    %29 = tpu.matmul %28, %25, %cst_12 {dimension_numbers = #tpu.dot_dimension_numbers<[1], [0], [0], [1], [0, 0, 1, 1], [], []>} : vector<8x64xbf16>, vector<64x128xbf16>, vector<8x128xf32> -> vector<8x128xf32>
    %30 = vector.broadcast %27 : vector<1x128xf32> to vector<8x128xf32>
    %31 = arith.addf %29, %30 : vector<8x128xf32>
    %32 = tpu.iota {dimensions = array<i32: 1>} : vector<8x128xi32>
    %c1_i32 = arith.constant 1 : i32
    %33 = vector.broadcast %c1_i32 : i32 to vector<8x128xi32>
    %34 = arith.cmpi sge, %32, %33 : vector<8x128xi32>
    %c9_i32 = arith.constant 9 : i32
    %35 = vector.broadcast %c9_i32 : i32 to vector<8x128xi32>
    %36 = arith.cmpi slt, %32, %35 : vector<8x128xi32>
    %37 = arith.andi %34, %36 : vector<8x128xi1>
    %cst_13 = arith.constant -1.000000e+30 : f32
    %38 = vector.broadcast %cst_13 : f32 to vector<8x128xf32>
    %39 = arith.select %37, %31, %38 : vector<8x128xi1>, vector<8x128xf32>
    %cst_14 = arith.constant dense<0xFF800000> : vector<8xf32>
    %40 = vector.multi_reduction <maximumf>, %39, %cst_14 [1] : vector<8x128xf32> to vector<8xf32>
    %41 = vector.shape_cast %40 : vector<8xf32> to vector<8x1xf32>
    %42 = vector.broadcast %41 : vector<8x1xf32> to vector<8x128xf32>
    %43 = arith.subf %39, %42 : vector<8x128xf32>
    %44 = math.exp %43 : vector<8x128xf32>
    %cst_15 = arith.constant dense<0.000000e+00> : vector<8xf32>
    %45 = vector.multi_reduction <add>, %44, %cst_15 [1] : vector<8x128xf32> to vector<8xf32>
    %46 = vector.shape_cast %45 : vector<8xf32> to vector<8x1xf32>
    %47 = vector.broadcast %46 : vector<8x1xf32> to vector<8x128xf32>
    %48 = arith.divf %44, %47 : vector<8x128xf32>
    %c0_i32 = arith.constant 0 : i32
    %49 = vector.broadcast %c0_i32 : i32 to vector<8x128xi32>
    %50 = arith.cmpi eq, %32, %49 : vector<8x128xi32>
    %51 = arith.select %50, %31, %48 : vector<8x128xi1>, vector<8x128xf32>
    %c0_16 = arith.constant 0 : index
    %c0_17 = arith.constant 0 : index
    %52 = vector.load %arg3[%c0_16, %c0_17] : memref<8x128xf32, #tpu.memory_space<vmem>>, vector<8x128xf32>
    tpu.vector_store %arg3[%c0_16, %c0_17], %51 {strides = array<i32>} : memref<8x128xf32, #tpu.memory_space<vmem>>, vector<8x128xf32>,
    return
  }
  func.func @transform_0(%arg0: i32) -> (i32, i32) {
    %c0_i32 = arith.constant 0 : i32
    %c0_i32_0 = arith.constant 0 : i32
    return %arg0, %c0_i32 : i32, i32
  }
  func.func @transform_1(%arg0: i32) -> (i32, i32) {
    %c0_i32 = arith.constant 0 : i32
    %c0_i32_0 = arith.constant 0 : i32
    %c0_i32_1 = arith.constant 0 : i32
    return %c0_i32, %c0_i32_0 : i32, i32
  }
  func.func @transform_2(%arg0: i32) -> (i32, i32) {
    %c0_i32 = arith.constant 0 : i32
    %c0_i32_0 = arith.constant 0 : i32
    return %arg0, %c0_i32 : i32, i32
  }
}

</mosaic_0001>

<llo_original>
// kernel: tpu_custom_call.1
$region0: #{tpu_custom_call.1}
  #allocation0 [shape = 'u32[]', space=smem, size = 0x4, offset = 0x4, fixed_abs, tag = 'smem constant byte address 0x4 - core index']
  #allocation1 [shape = 'u32[144,128]{1,0:T(1,128)}', space=vmem, size = 0x12000, scoped, tag = 'internal scratch']
  %s0 = inlined_call_operand.hbm [shape: f32[16,16], index: 0, kind: input, shape index: {}]
  %s1 = inlined_call_operand.hbm [shape: bf16[224,128], index: 1, kind: input, shape index: {}]
  %s2 = inlined_call_operand.hbm [shape: f32[16,128], index: 2, kind: output, shape index: {}]
  %s3 = sld [smem:[#allocation0]]
  $region49: #{tpu_custom_call.1} parent=0
    _
  %s5 = ssub.s32 1, %s3
  %s6 = scalar_select 0, %s5, %s3
  $region1: #{tpu_custom_call.1} parent=0
    #allocation2 [shape = 'u8[8192]{0}', space=vmem, size = 0x2000, scoped, tag = 'input window, operand 0']
    #allocation3 [shape = 's32[2]{0}', space=sflag, size = 0x8, scoped, tag = 'scoped memory for tpu_custom_call.1']
    #allocation4 [shape = 's32[2]{0}', space=sflag, size = 0x8, scoped, tag = 'scoped memory for tpu_custom_call.1']
    #allocation5 [shape = 'u8[57344]{0}', space=vmem, size = 0xe000, scoped, tag = 'input window, operand 1, single buffered']
    #allocation6 [shape = 's32[1]{0}', space=sflag, size = 0x4, scoped, tag = 'scoped memory for tpu_custom_call.1']
    #allocation7 [shape = 'u8[8192]{0}', space=vmem, size = 0x2000, scoped, tag = 'output window, operand 0']
    %7 = vsyncpa [#allocation3], 0
    %s8 = scalar_lea.sflag [#allocation3], 1
    %9 = vsyncpa %s8, 0
    %10 = vsyncpa [#allocation6], 0
    %11 = vsyncpa [#allocation4], 0
    %s12 = scalar_lea.sflag [#allocation4], 1
    %13 = vsyncpa %s12, 0
    loop: start=0, step=1, limit=4
    $region2: #{tpu_custom_call.1} parent=1 // loop_pre_header
      _
    $region3: #{tpu_custom_call.1} parent=1 // loop_header
      %s15 = sphi 0, %s19
      %p16 = scmp.ge.s32.totalorder %s15, 4
      %s25 = sphi 0, %s27
      %s28 = sphi 0, %s25
      %s29 = sphi 0, %s28
      %s45 = sphi 0, %s29
      %s49 = sphi 0, %s49
      %s51 = sphi 0, %s49
      %s52 = sphi 0, %s51
      %s66 = sphi 0, %s52
      %s72 = sphi 0, %s74
      %s75 = sphi 0, %s72
      %s76 = sphi 0, %s75
      %s92 = sphi 0, %s76
    $region4: #{tpu_custom_call.1} parent=1 // loop_header_branch
      %18 = sbr.rel (%p16) target = $region8
    $region5: #{tpu_custom_call.1} parent=1 // loop_body
      %s20 = ssub.s32 %s15, 1
      %s21 = ssub.s32 %s15, 2
      %s22 = sadd.s32 %s15, 1
      %s23 = ssub.s32 %s15, %s22
      %p24 = scmp.eq.s32.totalorder %s23, 0
      %s26 = sadd.s32 %s25, 1
      %s27 = scalar_select %p24, %s25, %s26
      %p30 = pneg %p24
      %p31 = scmp.eq.s32.totalorder %s15, 1
      %p32 = por %p30, %p31
      %p33 = scmp.ne.s32.totalorder %s25, %s28
      %p34 = scmp.eq.s32.totalorder %s15, 0
      %p35 = por %p33, %p34
      %p36 = scmp.ne.s32.totalorder %s25, %s28
      %p37 = scmp.eq.s32.totalorder %s20, 1
      %p38 = por %p36, %p37
      %p39 = scmp.ne.s32.totalorder %s28, %s29
      %p40 = scmp.eq.s32.totalorder %s20, 0
      %p41 = por %p39, %p40
      %p42 = scmp.ne.s32.totalorder %s28, %s29
      %p43 = scmp.eq.s32.totalorder %s21, 1
      %p44 = por %p42, %p43
      %p46 = scmp.ne.s32.totalorder %s29, %s45
      %p47 = scmp.eq.s32.totalorder %s21, 0
      %p48 = por %p46, %p47
      %s50 = sadd.s32 %s49, 1
      %p53 = scmp.eq.s32.totalorder %s15, 1
      %p54 = scmp.ne.s32.totalorder %s49, %s51
      %p55 = scmp.eq.s32.totalorder %s15, 0
      %p56 = por %p54, %p55
      %p57 = scmp.ne.s32.totalorder %s49, %s51
      %p58 = scmp.eq.s32.totalorder %s20, 1
      %p59 = por %p57, %p58
      %p60 = scmp.ne.s32.totalorder %s51, %s52
      %p61 = scmp.eq.s32.totalorder %s20, 0
      %p62 = por %p60, %p61
      %p63 = scmp.ne.s32.totalorder %s51, %s52
      %p64 = scmp.eq.s32.totalorder %s21, 1
      %p65 = por %p63, %p64
      %p67 = scmp.ne.s32.totalorder %s52, %s66
      %p68 = scmp.eq.s32.totalorder %s21, 0
      %p69 = por %p67, %p68
      %s70 = ssub.s32 %s15, %s22
      %p71 = scmp.eq.s32.totalorder %s70, 0
      %s73 = sadd.s32 %s72, 1
      %s74 = scalar_select %p71, %s72, %s73
      %p77 = pneg %p71
      %p78 = scmp.eq.s32.totalorder %s15, 1
      %p79 = por %p77, %p78
      %p80 = scmp.ne.s32.totalorder %s72, %s75
      %p81 = scmp.eq.s32.totalorder %s15, 0
      %p82 = por %p80, %p81
      %p83 = scmp.ne.s32.totalorder %s72, %s75
      %p84 = scmp.eq.s32.totalorder %s20, 1
      %p85 = por %p83, %p84
      %p86 = scmp.ne.s32.totalorder %s75, %s76
      %p87 = scmp.eq.s32.totalorder %s20, 0
      %p88 = por %p86, %p87
      %p89 = scmp.ne.s32.totalorder %s75, %s76
      %p90 = scmp.eq.s32.totalorder %s21, 1
      %p91 = por %p89, %p90
      %p93 = scmp.ne.s32.totalorder %s76, %s92
      %p94 = scmp.eq.s32.totalorder %s21, 0
      %p95 = por %p93, %p94
      %p96 = scmp.le.s32.totalorder 1, %s15
      %p97 = scmp.lt.s32.totalorder %s15, 3
      %p98 = pnand %p96, %p97
      %p99 = pneg %p98
      // Predicated region
      $region9: #{tpu_custom_call.1} parent=5 // pred_check
        _
      $region10: #{tpu_custom_call.1} parent=5 // pred_check_branch
        %101 = sbr.rel (%p98) target = $region12
      $region11: #{tpu_custom_call.1} parent=5 // pred_region
        %s102 = ssub.s32 %s15, 1
        // Predicated region
        $region13: #{tpu_custom_call.1} parent=11 // pred_check
          %p103 = pneg %p62
        $region14: #{tpu_custom_call.1} parent=11 // pred_check_branch
          %105 = sbr.rel (%p103) target = $region16
        $region15: #{tpu_custom_call.1} parent=11 // pred_region
          %s107 = ssub.s32 1792, 1792
          %108 = vsyncadd [#allocation6], %s107
          %s109 = sshll.u32 [#allocation5], 4
          %s110 = int_to_ptr.vmem [resolvable:$true] %s109
          %115 = dma.hbm_to_vmem [thread:$0]  %s1, 1792, %s110, [#allocation6], 64, 64, 4
        $region16: #{tpu_custom_call.1} parent=11 // pred_fallthru
          _
      $region12: #{tpu_custom_call.1} parent=5 // pred_fallthru
        _
      %p116 = scmp.lt.s32.totalorder %s15, 2
      // Predicated region
      $region17: #{tpu_custom_call.1} parent=5 // pred_check
        %p117 = pneg %p116
      $region18: #{tpu_custom_call.1} parent=5 // pred_check_branch
        %119 = sbr.rel (%p117) target = $region20
      $region19: #{tpu_custom_call.1} parent=5 // pred_region
        // Predicated region
        $region21: #{tpu_custom_call.1} parent=19 // pred_check
          %p120 = pneg %p35
        $region22: #{tpu_custom_call.1} parent=19 // pred_check_branch
          %122 = sbr.rel (%p120) target = $region24
        $region23: #{tpu_custom_call.1} parent=19 // pred_region
          %s123 = sand.u32 %s25, 1
          %s124 = scalar_lea.sflag [#allocation3], %s123
          %s125 = sand.u32 %s25, 1
          %s126 = smul.addr %s125, 8
          %s127 = scalar_lea.vmem [#allocation2], %s126
          %s129 = ssub.s32 128, 128
          %130 = vsyncadd %s124, %s129
          %s131 = smul.addr %s15, 128
          %s132 = scalar_lea.hbm %s0, %s131
          %s134 = sshll.u32 %s127, 4
          %s135 = int_to_ptr.vmem [resolvable:$true] %s134
          %137 = dma.hbm_to_vmem [thread:$0]  %s132, 128, %s135, %s124
        $region24: #{tpu_custom_call.1} parent=19 // pred_fallthru
          _
      $region20: #{tpu_custom_call.1} parent=5 // pred_fallthru
        _
      %p138 = scmp.le.s32.totalorder 1, %s15
      %p139 = scmp.lt.s32.totalorder %s15, 3
      %p140 = pnand %p138, %p139
      %p141 = pneg %p140
      // Predicated region
      $region25: #{tpu_custom_call.1} parent=5 // pred_check
        _
      $region26: #{tpu_custom_call.1} parent=5 // pred_check_branch
        %143 = sbr.rel (%p140) target = $region28
      $region27: #{tpu_custom_call.1} parent=5 // pred_region
        %s144 = ssub.s32 %s15, 1
        %s145 = sand.u32 %s28, 1
        %s146 = scalar_lea.sflag [#allocation3], %s145
        %s147 = sand.u32 %s28, 1
        %s148 = smul.addr %s147, 8
        %s149 = scalar_lea.vmem [#allocation2], %s148
        // Predicated region
        $region29: #{tpu_custom_call.1} parent=27 // pred_check
          %p150 = pneg %p41
        $region30: #{tpu_custom_call.1} parent=27 // pred_check_branch
          %152 = sbr.rel (%p150) target = $region32
        $region31: #{tpu_custom_call.1} parent=27 // pred_region
          %153 = dma.done %s146, 128
        $region32: #{tpu_custom_call.1} parent=27 // pred_fallthru
          _
        // Predicated region
        $region33: #{tpu_custom_call.1} parent=27 // pred_check
          %p154 = pneg %p62
        $region34: #{tpu_custom_call.1} parent=27 // pred_check_branch
          %156 = sbr.rel (%p154) target = $region36
        $region35: #{tpu_custom_call.1} parent=27 // pred_region
          %157 = dma.done [#allocation6], 1792
        $region36: #{tpu_custom_call.1} parent=27 // pred_fallthru
          _
        %s158 = sand.u32 %s28, 1
        %s159 = scalar_lea.sflag [#allocation3], %s158
        %s160 = sand.u32 %s28, 1
        %s161 = smul.addr %s160, 8
        %s162 = scalar_lea.vmem [#allocation2], %s161
        %p163 = pneg %p41
        %p164 = pneg %p38
        %p165 = pneg %p62
        %p166 = pneg %p59
        %p167 = pneg %p88
        %p168 = pneg %p85
        %s169 = sand.u32 %s75, 1
        %s170 = scalar_lea.sflag [#allocation4], %s169
        %s171 = sand.u32 %s75, 1
        %s172 = smul.addr %s171, 8
        %s173 = scalar_lea.vmem [#allocation7], %s172
        %v175 = vld [vmem:[%s149] sm:$0xff]
        %v176 = vld [vmem:[#allocation5] sm:$0xf]
        %v177 = vld [vmem:[#allocation5 + $0x4] sm:$0xf]
        %v178 = vld [vmem:[#allocation5 + $0x68] sm:$0x1]
        %v179 = vunpack.c.l.bf16 %v178
        %v180 = vpack.c.bf16 %v175, %v175
        %v181 = vlaneseq
        %v182 = vshrl.u32 %v181, 7
        %v183 = vsub.s32 0, %v182
        %v184 = vrot.slane %v179, %v183
        %v187 = vunpack.c.l.b16 %v176
        %v188 = vunpack.c.l.b16 %v177
        %v189 = vpack.c.b16 %v188, %v187
        %vm191 = vcmask 130048
        %v193 = vsel %vm191, %v180, 0
        %195 = vmatprep.subr.bf16.mxu0 0
        %196 = vmatpush1.bf16.msra.mxu0 %v189
        %197 = vmatprep.subr.bf16.mxu0 0
        %198 = vmatpush1.bf16.msra.mxu0 0
        %199 = vmatprep.subr.bf16.mxu0 0
        %200 = vmatpush1.bf16.msra.mxu0 0
        %201 = vmatprep.subr.bf16.mxu0 0
        %202 = vmatpush1.bf16.msra.mxu0 0
        %203 = vmatprep.subr.bf16.mxu0 0
        %204 = vmatpush1.bf16.msra.mxu0 0
        %205 = vmatprep.subr.bf16.mxu0 0
        %206 = vmatpush1.bf16.msra.mxu0 0
        %207 = vmatprep.subr.bf16.mxu0 0
        %208 = vmatpush1.bf16.msra.mxu0 0
        %209 = vmatprep.subr.bf16.mxu0 0
        %210 = vmatpush1.bf16.msra.mxu0 0
        %211 = vmatprep.subr.bf16.mxu0 0
        %212 = vmatpush1.bf16.msra.mxu0 0
        %213 = vmatprep.subr.bf16.mxu0 0
        %214 = vmatpush1.bf16.msra.mxu0 0
        %215 = vmatprep.subr.bf16.mxu0 0
        %216 = vmatpush1.bf16.msra.mxu0 0
        %217 = vmatprep.subr.bf16.mxu0 0
        %218 = vmatpush1.bf16.msra.mxu0 0
        %219 = vmatprep.subr.bf16.mxu0 0
        %220 = vmatpush1.bf16.msra.mxu0 0
        %221 = vmatprep.subr.bf16.mxu0 0
        %222 = vmatpush1.bf16.msra.mxu0 0
        %223 = vmatprep.subr.bf16.mxu0 0
        %224 = vmatpush1.bf16.msra.mxu0 0
        %225 = vmatprep.subr.bf16.mxu0 0
        %226 = vmatpush1.bf16.msra.mxu0 0
        %227 = vmatprep.mubr.bf16.mxu0 0
        %228 = vmatmul.mubr.bf16.gmra.mrb[0].mxu0 %v193
        %v229 = vpop.f32.mrb[0].mxu0
        %v230 = vadd.f32 %v184, %v229
        %v231 = vpop.f32.mrb[0].mxu0
        %v232 = vpop.f32.mrb[0].mxu0
        %v233 = vpop.f32.mrb[0].mxu0
        %234 = vdwg.mxu0
        %v235 = vtanh.pop %v230
        %v236 = vld [vmem:[#allocation5 + $0x8] sm:$0xf]
        %v237 = vld [vmem:[#allocation5 + $0xc] sm:$0xf]
        %v238 = vld [vmem:[#allocation5 + $0x10] sm:$0xf]
        %v239 = vld [vmem:[#allocation5 + $0x14] sm:$0xf]
        %v240 = vld [vmem:[#allocation5 + $0x18] sm:$0xf]
        %v241 = vld [vmem:[#allocation5 + $0x1c] sm:$0xf]
        %v242 = vld [vmem:[#allocation5 + $0x20] sm:$0xf]
        %v243 = vld [vmem:[#allocation5 + $0x24] sm:$0xf]
        %v244 = vpack.c.bf16 %v235, %v235
        %v245 = vlaneseq
        %v246 = vshrl.u32 %v245, 7
        %v247 = vsub.s32 1, %v246
        %v248 = vrot.slane %v179, %v247
        %v257 = vunpack.c.l.b16 %v236
        %v258 = vunpack.c.l.b16 %v237
        %v259 = vunpack.c.l.b16 %v238
        %v260 = vunpack.c.l.b16 %v239
        %v261 = vunpack.c.l.b16 %v240
        %v262 = vunpack.c.l.b16 %v241
        %v263 = vunpack.c.l.b16 %v242
        %v264 = vunpack.c.l.b16 %v243
        %v265 = vpack.c.b16 %v258, %v257
        %v266 = vpack.c.b16 %v260, %v259
        %v267 = vpack.c.b16 %v262, %v261
        %v268 = vpack.c.b16 %v264, %v263
        %vm273 = vcmask 523264
        %v275 = vsel %vm273, %v244, 0
        %277 = vmatprep.subr.bf16.mxu0 0
        %278 = vmatpush1.bf16.msra.mxu0 %v265
        %279 = vmatprep.subr.bf16.mxu0 0
        %280 = vmatpush1.bf16.msra.mxu0 %v266
        %281 = vmatprep.subr.bf16.mxu0 0
        %282 = vmatpush1.bf16.msra.mxu0 %v267
        %283 = vmatprep.subr.bf16.mxu0 0
        %284 = vmatpush1.bf16.msra.mxu0 %v268
        %285 = vmatprep.subr.bf16.mxu0 0
        %286 = vmatpush1.bf16.msra.mxu0 0
        %287 = vmatprep.subr.bf16.mxu0 0
        %288 = vmatpush1.bf16.msra.mxu0 0
        %289 = vmatprep.subr.bf16.mxu0 0
        %290 = vmatpush1.bf16.msra.mxu0 0
        %291 = vmatprep.subr.bf16.mxu0 0
        %292 = vmatpush1.bf16.msra.mxu0 0
        %293 = vmatprep.subr.bf16.mxu0 0
        %294 = vmatpush1.bf16.msra.mxu0 0
        %295 = vmatprep.subr.bf16.mxu0 0
        %296 = vmatpush1.bf16.msra.mxu0 0
        %297 = vmatprep.subr.bf16.mxu0 0
        %298 = vmatpush1.bf16.msra.mxu0 0
        %299 = vmatprep.subr.bf16.mxu0 0
        %300 = vmatpush1.bf16.msra.mxu0 0
        %301 = vmatprep.subr.bf16.mxu0 0
        %302 = vmatpush1.bf16.msra.mxu0 0
        %303 = vmatprep.subr.bf16.mxu0 0
        %304 = vmatpush1.bf16.msra.mxu0 0
        %305 = vmatprep.subr.bf16.mxu0 0
        %306 = vmatpush1.bf16.msra.mxu0 0
        %307 = vmatprep.subr.bf16.mxu0 0
        %308 = vmatpush1.bf16.msra.mxu0 0
        %309 = vmatprep.mubr.bf16.mxu0 0
        %310 = vmatmul.mubr.bf16.gmra.mrb[0].mxu0 %v275
        %v311 = vpop.f32.mrb[0].mxu0
        %v312 = vadd.f32 %v248, %v311
        %v313 = vpop.f32.mrb[0].mxu0
        %v314 = vpop.f32.mrb[0].mxu0
        %v315 = vpop.f32.mrb[0].mxu0
        %316 = vdwg.mxu0
        %v317 = vtanh.pop %v312
        %v318 = vld [vmem:[#allocation5 + $0x28] sm:$0xf]
        %v319 = vld [vmem:[#allocation5 + $0x2c] sm:$0xf]
        %v320 = vld [vmem:[#allocation5 + $0x30] sm:$0xf]
        %v321 = vld [vmem:[#allocation5 + $0x34] sm:$0xf]
        %v322 = vld [vmem:[#allocation5 + $0x38] sm:$0xf]
        %v323 = vld [vmem:[#allocation5 + $0x3c] sm:$0xf]
        %v324 = vld [vmem:[#allocation5 + $0x40] sm:$0xf]
        %v325 = vld [vmem:[#allocation5 + $0x44] sm:$0xf]
        %v326 = vld [vmem:[#allocation5 + $0x68] sm:$0x2]
        %v327 = vunpack.c.l.bf16 %v326
        %v328 = vpack.c.bf16 %v317, %v317
        %v329 = vlaneseq
        %v330 = vshrl.u32 %v329, 7
        %v331 = vsub.s32 2, %v330
        %v332 = vrot.slane %v327, %v331
        %v341 = vunpack.c.l.b16 %v318
        %v342 = vunpack.c.l.b16 %v319
        %v343 = vunpack.c.l.b16 %v320
        %v344 = vunpack.c.l.b16 %v321
        %v345 = vunpack.c.l.b16 %v322
        %v346 = vunpack.c.l.b16 %v323
        %v347 = vunpack.c.l.b16 %v324
        %v348 = vunpack.c.l.b16 %v325
        %v349 = vpack.c.b16 %v342, %v341
        %v350 = vpack.c.b16 %v344, %v343
        %v351 = vpack.c.b16 %v346, %v345
        %v352 = vpack.c.b16 %v348, %v347
        %v358 = vsel %vm273, %v328, 0
        %360 = vmatprep.subr.bf16.mxu0 0
        %361 = vmatpush1.bf16.msra.mxu0 %v349
        %362 = vmatprep.subr.bf16.mxu0 0
        %363 = vmatpush1.bf16.msra.mxu0 %v350
        %364 = vmatprep.subr.bf16.mxu0 0
        %365 = vmatpush1.bf16.msra.mxu0 %v351
        %366 = vmatprep.subr.bf16.mxu0 0
        %367 = vmatpush1.bf16.msra.mxu0 %v352
        %368 = vmatprep.subr.bf16.mxu0 0
        %369 = vmatpush1.bf16.msra.mxu0 0
        %370 = vmatprep.subr.bf16.mxu0 0
        %371 = vmatpush1.bf16.msra.mxu0 0
        %372 = vmatprep.subr.bf16.mxu0 0
        %373 = vmatpush1.bf16.msra.mxu0 0
        %374 = vmatprep.subr.bf16.mxu0 0
        %375 = vmatpush1.bf16.msra.mxu0 0
        %376 = vmatprep.subr.bf16.mxu0 0
        %377 = vmatpush1.bf16.msra.mxu0 0
        %378 = vmatprep.subr.bf16.mxu0 0
        %379 = vmatpush1.bf16.msra.mxu0 0
        %380 = vmatprep.subr.bf16.mxu0 0
        %381 = vmatpush1.bf16.msra.mxu0 0
        %382 = vmatprep.subr.bf16.mxu0 0
        %383 = vmatpush1.bf16.msra.mxu0 0
        %384 = vmatprep.subr.bf16.mxu0 0
        %385 = vmatpush1.bf16.msra.mxu0 0
        %386 = vmatprep.subr.bf16.mxu0 0
        %387 = vmatpush1.bf16.msra.mxu0 0
        %388 = vmatprep.subr.bf16.mxu0 0
        %389 = vmatpush1.bf16.msra.mxu0 0
        %390 = vmatprep.subr.bf16.mxu0 0
        %391 = vmatpush1.bf16.msra.mxu0 0
        %392 = vmatprep.mubr.bf16.mxu0 0
        %393 = vmatmul.mubr.bf16.gmra.mrb[0].mxu0 %v358
        %v394 = vpop.f32.mrb[0].mxu0
        %v395 = vadd.f32 %v332, %v394
        %v396 = vpop.f32.mrb[0].mxu0
        %v397 = vpop.f32.mrb[0].mxu0
        %v398 = vpop.f32.mrb[0].mxu0
        %399 = vdwg.mxu0
        %v400 = vtanh.pop %v395
        %v401 = vld [vmem:[#allocation5 + $0x48] sm:$0xf]
        %v402 = vld [vmem:[#allocation5 + $0x4c] sm:$0xf]
        %v403 = vld [vmem:[#allocation5 + $0x50] sm:$0xf]
        %v404 = vld [vmem:[#allocation5 + $0x54] sm:$0xf]
        %v405 = vld [vmem:[#allocation5 + $0x58] sm:$0xf]
        %v406 = vld [vmem:[#allocation5 + $0x5c] sm:$0xf]
        %v407 = vld [vmem:[#allocation5 + $0x60] sm:$0xf]
        %v408 = vld [vmem:[#allocation5 + $0x64] sm:$0xf]
        %v409 = vpack.c.bf16 %v400, %v400
        %v410 = vlaneseq
        %v411 = vshrl.u32 %v410, 7
        %v412 = vsub.s32 3, %v411
        %v413 = vrot.slane %v327, %v412
        %v422 = vunpack.c.l.b16 %v401
        %v423 = vunpack.c.l.b16 %v402
        %v424 = vunpack.c.l.b16 %v403
        %v425 = vunpack.c.l.b16 %v404
        %v426 = vunpack.c.l.b16 %v405
        %v427 = vunpack.c.l.b16 %v406
        %v428 = vunpack.c.l.b16 %v407
        %v429 = vunpack.c.l.b16 %v408
        %v430 = vpack.c.b16 %v423, %v422
        %v431 = vpack.c.b16 %v425, %v424
        %v432 = vpack.c.b16 %v427, %v426
        %v433 = vpack.c.b16 %v429, %v428
        %v439 = vsel %vm273, %v409, 0
        %441 = vmatprep.subr.bf16.mxu0 0
        %442 = vmatpush1.bf16.msra.mxu0 %v430
        %443 = vmatprep.subr.bf16.mxu0 0
        %444 = vmatpush1.bf16.msra.mxu0 %v431
        %445 = vmatprep.subr.bf16.mxu0 0
        %446 = vmatpush1.bf16.msra.mxu0 %v432
        %447 = vmatprep.subr.bf16.mxu0 0
        %448 = vmatpush1.bf16.msra.mxu0 %v433
        %449 = vmatprep.subr.bf16.mxu0 0
        %450 = vmatpush1.bf16.msra.mxu0 0
        %451 = vmatprep.subr.bf16.mxu0 0
        %452 = vmatpush1.bf16.msra.mxu0 0
        %453 = vmatprep.subr.bf16.mxu0 0
        %454 = vmatpush1.bf16.msra.mxu0 0
        %455 = vmatprep.subr.bf16.mxu0 0
        %456 = vmatpush1.bf16.msra.mxu0 0
        %457 = vmatprep.subr.bf16.mxu0 0
        %458 = vmatpush1.bf16.msra.mxu0 0
        %459 = vmatprep.subr.bf16.mxu0 0
        %460 = vmatpush1.bf16.msra.mxu0 0
        %461 = vmatprep.subr.bf16.mxu0 0
        %462 = vmatpush1.bf16.msra.mxu0 0
        %463 = vmatprep.subr.bf16.mxu0 0
        %464 = vmatpush1.bf16.msra.mxu0 0
        %465 = vmatprep.subr.bf16.mxu0 0
        %466 = vmatpush1.bf16.msra.mxu0 0
        %467 = vmatprep.subr.bf16.mxu0 0
        %468 = vmatpush1.bf16.msra.mxu0 0
        %469 = vmatprep.subr.bf16.mxu0 0
        %470 = vmatpush1.bf16.msra.mxu0 0
        %471 = vmatprep.subr.bf16.mxu0 0
        %472 = vmatpush1.bf16.msra.mxu0 0
        %473 = vmatprep.mubr.bf16.mxu0 0
        %474 = vmatmul.mubr.bf16.gmra.mrb[0].mxu0 %v439
        %v475 = vpop.f32.mrb[0].mxu0
        %v476 = vadd.f32 %v413, %v475
        %v477 = vpop.f32.mrb[0].mxu0
        %v478 = vpop.f32.mrb[0].mxu0
        %v479 = vpop.f32.mrb[0].mxu0
        %480 = vdwg.mxu0
        %v481 = vlaneseq
        %v482 = vand.u32 %v481, 127
        %vm483 = vcmp.ge.s32.totalorder %v482, 1
        %vm484 = vcmp.lt.s32.totalorder %v482, 9
        %vm485 = vmand %vm483, %vm484
        %v486 = vsel %vm485, %v476, -1e+30
        %487 = vmax.xlane.f32.xlu0 %v486
        %v488 = vpop.xlane.xlu0 %487
        %v489 = vsub.f32 %v486, %v488
        %v490 = vmul.f32 %v489, 1.442695
        %v491 = vpow.pop %v490
        %492 = vadd.xlane.f32.xlu0 %v491
        %v493 = vpop.xlane.xlu0 %492
        %v494 = vrcp.pop %v493
        %v495 = vmul.f32 %v491, %v494
        %vm496 = vcmp.eq.s32.totalorder %v482, 0
        %v497 = vsel %vm496, %v476, %v495
        %498 = vst [vmem:[%s173] sm:$0xff] %v497
        %s499 = sand.u32 %s75, 1
        %s500 = scalar_lea.sflag [#allocation4], %s499
        %s501 = sand.u32 %s75, 1
        %s502 = smul.addr %s501, 8
        %s503 = scalar_lea.vmem [#allocation7], %s502
        // Predicated region
        $region37: #{tpu_custom_call.1} parent=27 // pred_check
          %p504 = pneg %p85
        $region38: #{tpu_custom_call.1} parent=27 // pred_check_branch
          %506 = sbr.rel (%p504) target = $region40
        $region39: #{tpu_custom_call.1} parent=27 // pred_region
          %s508 = ssub.s32 128, 128
          %509 = vsyncadd %s500, %s508
          %s510 = smul.addr %s20, 128
          %s511 = scalar_lea.hbm %s2, %s510
          %s513 = sshll.u32 %s503, 4
          %s514 = int_to_ptr.vmem [resolvable:$true] %s513
          %516 = dma.vmem_to_hbm [thread:$0]  %s514, 128, %s511, %s500
        $region40: #{tpu_custom_call.1} parent=27 // pred_fallthru
          _
      $region28: #{tpu_custom_call.1} parent=5 // pred_fallthru
        _
      %p517 = scmp.le.s32.totalorder 2, %s15
      // Predicated region
      $region41: #{tpu_custom_call.1} parent=5 // pred_check
        %p518 = pneg %p517
      $region42: #{tpu_custom_call.1} parent=5 // pred_check_branch
        %520 = sbr.rel (%p518) target = $region44
      $region43: #{tpu_custom_call.1} parent=5 // pred_region
        %s521 = ssub.s32 %s15, 2
        // Predicated region
        $region45: #{tpu_custom_call.1} parent=43 // pred_check
          %p522 = pneg %p91
        $region46: #{tpu_custom_call.1} parent=43 // pred_check_branch
          %524 = sbr.rel (%p522) target = $region48
        $region47: #{tpu_custom_call.1} parent=43 // pred_region
          %s525 = sand.u32 %s76, 1
          %s526 = scalar_lea.sflag [#allocation4], %s525
          %s527 = sand.u32 %s76, 1
          %s528 = smul.addr %s527, 8
          %s529 = scalar_lea.vmem [#allocation7], %s528
          %530 = dma.done %s526, 128
        $region48: #{tpu_custom_call.1} parent=43 // pred_fallthru
          _
      $region44: #{tpu_custom_call.1} parent=5 // pred_fallthru
        _
    $region6: #{tpu_custom_call.1} parent=1 // loop_footer
      %s19 = sadd.s32 1, %s15
    $region7: #{tpu_custom_call.1} parent=1 // loop_footer_branch
      %14 = sbr.rel target = $region3
    $region8: #{tpu_custom_call.1} parent=1 // loop_exit
      _
    %531 = vsyncpa [#allocation3], 1
    %s532 = scalar_lea.sflag [#allocation3], 1
    %533 = vsyncpa %s532, 1
    %534 = vsyncpa [#allocation6], 1
    %535 = vsyncpa [#allocation4], 1
    %s536 = scalar_lea.sflag [#allocation4], 1
    %537 = vsyncpa %s536, 1

</llo_original>
